<compile_context>
chip_gen: v5e
topology: v5e:2x2
jax: 0.10.0
libtpu: 0.0.40
codegen_flags: <defaults>
</compile_context>

<pallas_src>
import functools
import math

import jax
import jax.numpy as jnp
import numpy as np
from jax.experimental import pallas as pl
from jax.experimental.pallas import tpu as pltpu

LOG_EPSILON = 1e-30
MIN_EPSILON = 1e-08


def _round_up(x, m):
    return ((x + m - 1) // m) * m


def _focal_pixel_kernel(before_ref, after_ref, loss_ref, amax_ref, label_ref, *,
                        gamma):
    """before_ref/after_ref: (C, T) logits; outputs: (1, T) per-pixel maps."""
    C = before_ref.shape[0]
    xb = before_ref[...].astype(jnp.float32)       # (C, T)
    xa = after_ref[...].astype(jnp.float32)        # (C, T)

    # Numerically stable softmax over the channel (sublane) axis.
    mb = jnp.max(xb, axis=0, keepdims=True)        # (1, T)
    eb = jnp.exp(xb - mb)
    db = jnp.sum(eb, axis=0, keepdims=True)
    p_b = eb / db                                  # preds_before

    ma = jnp.max(xa, axis=0, keepdims=True)
    ea = jnp.exp(xa - ma)
    da = jnp.sum(ea, axis=0, keepdims=True)
    p_a = ea / da                                  # preds_after
    log_p_a = jnp.log(p_a + LOG_EPSILON)

    # First-argmax channel of preds_before (== argmax of logits_before).
    iota_c = jax.lax.broadcasted_iota(jnp.int32, xb.shape, 0)
    cand = jnp.where(xb == mb, iota_c, C)
    label = jnp.min(cand, axis=0, keepdims=True)   # (1, T) int32

    # Max softmax prob of `before`: exp(0) / db == 1 / db.
    amax_b = 1.0 / db                              # (1, T)

    # preds_after at the argmax-of-before channel.
    p_a_sel = jnp.sum(jnp.where(iota_c == label, p_a, 0.0),
                      axis=0, keepdims=True)

    # |select_difference| ** gamma
    sd = jnp.abs(amax_b - p_a_sel)
    sd_pow = sd if gamma == 1 else sd ** gamma

    # loss_kldiv + loss_entropy summed over C collapses to
    #   |sd|^gamma * ( -sum_c p_before * log(p_after + eps) )
    ce = -jnp.sum(p_b * log_p_a, axis=0, keepdims=True)

    loss_ref[...] = sd_pow * ce
    amax_ref[...] = amax_b
    label_ref[...] = label


def _ias_thresh(amax_flat, label_flat, cls_thresh, *, alpha, gamma):
    """Per-class adaptive thresholds (fixed-size emulation of the torch loop)."""
    n_class = cls_thresh.shape[0]

    def per_class(idx_cls, thr):
        mask = label_flat == idx_cls
        count = jnp.sum(mask)                                    # L
        vals = jnp.where(mask, amax_flat, -jnp.inf)
        ext = jnp.concatenate([vals, thr[None]])                 # (M + 1,)
        ext_desc = -jnp.sort(-ext)                               # descending; -inf last
        index = jnp.floor(
            (count + 1).astype(jnp.float32) * alpha * thr ** gamma
        ).astype(jnp.int32)
        # index < L + 1 always (alpha * thr**gamma < 1), so it lands in the
        # "real values" prefix; the L == 0 case reduces to the old threshold.
        return ext_desc[index]

    return jax.vmap(per_class)(jnp.arange(n_class, dtype=jnp.int32), cls_thresh)


@functools.partial(
    jax.jit,
    static_argnames=("focal_gamma", "pseudo_pl_alpha", "pseudo_pl_gamma",
                     "pseudo_pl_beta", "beta_decay", "iteration",
                     "uda_confidence_thresh", "uda_softmax_temp", "tile"))
def adapt_unsup_focal_loss(logits_before, logits_after, cls_thresh, *,
                           focal_gamma=1, pseudo_pl_alpha=0.2,
                           pseudo_pl_gamma=8.0, pseudo_pl_beta=0.9,
                           beta_decay=0, iteration=10000,
                           uda_confidence_thresh=0.8, uda_softmax_temp=-1,
                           tile=2048):
    """Returns (mean_loss, adapt_ratio, solid_ratio, new_cls_thresh)."""
    N, C, H, W = logits_before.shape
    if uda_softmax_temp != -1:
        logits_before = logits_before / uda_softmax_temp
    HW = H * W

    # Layout flip: reshape only (no transpose); pixels map to the lane axis.
    xb = logits_before.reshape(N, C, HW).astype(jnp.float32)
    xa = logits_after.reshape(N, C, HW).astype(jnp.float32)

    T = min(tile, _round_up(HW, 128))
    HWp = _round_up(HW, T)
    if HWp != HW:
        # TODO(synk): mask the tail tile in-kernel instead of padding (avoids
        # an extra HBM copy for large inputs); padded columns are sliced off.
        pad = HWp - HW
        xb = jnp.pad(xb, ((0, 0), (0, 0), (0, pad)))
        xa = jnp.pad(xa, ((0, 0), (0, 0), (0, pad)))

    grid = (N, HWp // T)
    kernel = functools.partial(_focal_pixel_kernel, gamma=focal_gamma)

    loss_map, amax, label = pl.pallas_call(
        kernel,
        out_shape=(
            jax.ShapeDtypeStruct((N, 1, HWp), jnp.float32),
            jax.ShapeDtypeStruct((N, 1, HWp), jnp.float32),
            jax.ShapeDtypeStruct((N, 1, HWp), jnp.int32),
        ),
        grid_spec=pltpu.PrefetchScalarGridSpec(
            num_scalar_prefetch=0,
            grid=grid,
            in_specs=[
                pl.BlockSpec((None, C, T), lambda n, j: (n, 0, j)),
                pl.BlockSpec((None, C, T), lambda n, j: (n, 0, j)),
            ],
            out_specs=[
                pl.BlockSpec((None, 1, T), lambda n, j: (n, 0, j)),
                pl.BlockSpec((None, 1, T), lambda n, j: (n, 0, j)),
                pl.BlockSpec((None, 1, T), lambda n, j: (n, 0, j)),
            ],
        ),
        compiler_params=pltpu.CompilerParams(
            dimension_semantics=("parallel", "parallel")),
    )(xb, xa)

    loss_map = loss_map[:, 0, :HW]            # (N, HW) per-pixel loss (sum over C)
    amax = amax[:, 0, :HW]                    # (N, HW) max prob of preds_before
    label = label[:, 0, :HW]                  # (N, HW) argmax channel

    # --- adaptive per-class thresholds + EMA (module state update) ---
    tmp_cls_thresh = _ias_thresh(amax.reshape(-1), label.reshape(-1),
                                 cls_thresh.astype(jnp.float32),
                                 alpha=pseudo_pl_alpha, gamma=pseudo_pl_gamma)
    if beta_decay > 0:
        beta = 1.0 - pseudo_pl_beta * math.exp(-iteration * beta_decay)
    else:
        beta = pseudo_pl_beta
    new_cls_thresh = beta * cls_thresh.astype(jnp.float32) \
        + (1.0 - beta) * tmp_cls_thresh
    new_cls_thresh = jnp.where(new_cls_thresh >= 1.0, 0.999, new_cls_thresh)

    # --- confidence masking + ratios + masked mean (uda_confidence_thresh != -1) ---
    label_cls_thresh = new_cls_thresh[label]
    loss_mask = amax > label_cls_thresh
    adapt_ratio = jnp.mean(loss_mask.astype(jnp.float32))
    solid_mask = amax > uda_confidence_thresh
    solid_ratio = jnp.mean(solid_mask.astype(jnp.float32))

    n_sel = jnp.sum(loss_mask).astype(jnp.float32)
    sel_sum = jnp.sum(jnp.where(loss_mask,
                                jnp.maximum(loss_map, MIN_EPSILON), 0.0))
    mean_loss = sel_sum / n_sel   # NaN if mask empty, matching torch.mean([])

    return mean_loss, adapt_ratio, solid_ratio, new_cls_thresh


# ---------------- pure-numpy reference mirroring the PyTorch forward ----------------
def _reference_forward(logits_before, logits_after, cls_thresh, *,
                       focal_gamma=1, pseudo_pl_alpha=0.2, pseudo_pl_gamma=8.0,
                       pseudo_pl_beta=0.9, beta_decay=0, iteration=10000,
                       uda_confidence_thresh=0.8):
    lb = np.asarray(logits_before, np.float32)
    la = np.asarray(logits_after, np.float32)

    def softmax(x):
        m = x.max(axis=1, keepdims=True)
        e = np.exp(x - m)
        return e / e.sum(axis=1, keepdims=True)

    preds_before = softmax(lb)
    preds_after = softmax(la)
    log_pb = np.log(preds_before + LOG_EPSILON)
    log_pa = np.log(preds_after + LOG_EPSILON)
    before_minus_after = preds_before - preds_after
    max_index = preds_before.argmax(axis=1)                 # (N, H, W)
    N, C, H, W = preds_before.shape
    select_mask = np.zeros_like(preds_before)
    np.put_along_axis(select_mask, max_index[:, None, :, :], 1.0, axis=1)
    sel_diff = (before_minus_after * select_mask).sum(axis=1)
    sel_diff = np.repeat(sel_diff[:, None, :, :], C, axis=1)
    loss_kldiv = preds_before * (log_pb - np.abs(sel_diff) ** focal_gamma * log_pa)
    loss_entropy = -preds_before * log_pb
    loss = (loss_kldiv + loss_entropy).sum(axis=1)          # (N, H, W)

    logits_pred = preds_before.max(axis=1)
    label_pred = max_index
    cls_thresh = np.asarray(cls_thresh, np.float64)
    n_class = cls_thresh.shape[0]
    tmp = np.ones(n_class, np.float64)
    for i in range(n_class):
        conf = logits_pred[label_pred == i]
        if conf.size == 0:
            tmp[i] = cls_thresh[i]
        else:
            ext = np.full(conf.size + 1, cls_thresh[i], dtype=np.float64)
            ext[:conf.size] = conf
            ext = np.sort(ext)[::-1]
            index = int(len(ext) * pseudo_pl_alpha * cls_thresh[i] ** pseudo_pl_gamma)
            tmp[i] = ext[index]
    if beta_decay > 0:
        beta = 1 - pseudo_pl_beta * math.exp(-iteration * beta_decay)
    else:
        beta = pseudo_pl_beta
    new_thr = beta * cls_thresh + (1 - beta) * tmp
    new_thr[new_thr >= 1] = 0.999

    label_cls_thresh = new_thr[label_pred]
    loss_mask = logits_pred > label_cls_thresh
    adapt_ratio = float(loss_mask.sum()) / loss_mask.size
    solid_mask = logits_pred > uda_confidence_thresh
    solid_ratio = float(solid_mask.sum()) / solid_mask.size
    sel = loss[loss_mask]
    sel = np.clip(sel, MIN_EPSILON, None)
    return float(sel.mean()), adapt_ratio, solid_ratio, new_thr


if __name__ == "__main__":
    key = jax.random.PRNGKey(0)
    k1, k2 = jax.random.split(key)

    N, C, H, W = 2, 4, 16, 16
    logits_before = 3.0 * jax.random.normal(k1, (N, C, H, W), dtype=jnp.float32)
    logits_after = logits_before + 0.5 * jax.random.normal(
        k2, (N, C, H, W), dtype=jnp.float32)
    cls_thresh = jnp.full((C,), 0.8, dtype=jnp.float32)   # module init state

    loss, adapt_ratio, solid_ratio, new_thr = adapt_unsup_focal_loss(
        logits_before, logits_after, cls_thresh)
    loss = jax.block_until_ready(loss)

    ref_loss, ref_adapt, ref_solid, ref_thr = _reference_forward(
        np.asarray(logits_before), np.asarray(logits_after),
        np.asarray(cls_thresh))

    assert np.isfinite(float(loss)), float(loss)
    assert np.allclose(float(loss), ref_loss, rtol=1e-4, atol=1e-5), \
        (float(loss), ref_loss)
    assert abs(float(adapt_ratio) - ref_adapt) < 1e-6, (float(adapt_ratio), ref_adapt)
    assert abs(float(solid_ratio) - ref_solid) < 1e-6, (float(solid_ratio), ref_solid)
    assert np.allclose(np.asarray(new_thr), ref_thr, rtol=1e-4, atol=1e-5), \
        (np.asarray(new_thr), ref_thr)

    print("KERNEL_OK")
</pallas_src>

<mosaic_0001>
module attributes {stable_mosaic.version = 11 : i64} {
  func.func @_focal_pixel_kernel(%arg0: i32, %arg1: i32, %arg2: memref<1x4x256xf32, #tpu.memory_space<vmem>>, %arg3: memref<1x4x256xf32, #tpu.memory_space<vmem>>, %arg4: memref<1x1x256xf32, #tpu.memory_space<vmem>>, %arg5: memref<1x1x256xf32, #tpu.memory_space<vmem>>, %arg6: memref<1x1x256xi32, #tpu.memory_space<vmem>>) attributes {dimension_semantics = [#tpu.dimension_semantics<parallel>, #tpu.dimension_semantics<parallel>], iteration_bounds = array<i64: 2, 1>, scalar_prefetch = 0 : i64, scratch_operands = 0 : i64, tpu.core_type = #tpu.core_type<tc>, window_params = [{transform_indices = @transform_0, window_bounds = array<i64: 1, 4, 256>}, {transform_indices = @transform_1, window_bounds = array<i64: 1, 4, 256>}, {transform_indices = @transform_2, window_bounds = array<i64: 1, 1, 256>}, {transform_indices = @transform_3, window_bounds = array<i64: 1, 1, 256>}, {transform_indices = @transform_4, window_bounds = array<i64: 1, 1, 256>}]} {
    %c0 = arith.constant 0 : index
    %c0_0 = arith.constant 0 : index
    %c0_1 = arith.constant 0 : index
    %0 = vector.load %arg2[%c0, %c0_0, %c0_1] : memref<1x4x256xf32, #tpu.memory_space<vmem>>, vector<1x4x256xf32>
    %1 = vector.shape_cast %0 : vector<1x4x256xf32> to vector<4x256xf32>
    %c0_2 = arith.constant 0 : index
    %c0_3 = arith.constant 0 : index
    %c0_4 = arith.constant 0 : index
    %2 = vector.load %arg3[%c0_2, %c0_3, %c0_4] : memref<1x4x256xf32, #tpu.memory_space<vmem>>, vector<1x4x256xf32>
    %3 = vector.shape_cast %2 : vector<1x4x256xf32> to vector<4x256xf32>
    %cst = arith.constant dense<0xFF800000> : vector<256xf32>
    %4 = vector.multi_reduction <maximumf>, %1, %cst [0] : vector<4x256xf32> to vector<256xf32>
    %5 = vector.shape_cast %4 : vector<256xf32> to vector<1x256xf32>
    %6 = vector.broadcast %5 : vector<1x256xf32> to vector<4x256xf32>
    %7 = arith.subf %1, %6 : vector<4x256xf32>
    %8 = math.exp %7 : vector<4x256xf32>
    %cst_5 = arith.constant dense<0.000000e+00> : vector<256xf32>
    %9 = vector.multi_reduction <add>, %8, %cst_5 [0] : vector<4x256xf32> to vector<256xf32>
    %10 = vector.shape_cast %9 : vector<256xf32> to vector<1x256xf32>
    %11 = vector.broadcast %10 : vector<1x256xf32> to vector<4x256xf32>
    %12 = arith.divf %8, %11 : vector<4x256xf32>
    %cst_6 = arith.constant dense<0xFF800000> : vector<256xf32>
    %13 = vector.multi_reduction <maximumf>, %3, %cst_6 [0] : vector<4x256xf32> to vector<256xf32>
    %14 = vector.shape_cast %13 : vector<256xf32> to vector<1x256xf32>
    %15 = vector.broadcast %14 : vector<1x256xf32> to vector<4x256xf32>
    %16 = arith.subf %3, %15 : vector<4x256xf32>
    %17 = math.exp %16 : vector<4x256xf32>
    %cst_7 = arith.constant dense<0.000000e+00> : vector<256xf32>
    %18 = vector.multi_reduction <add>, %17, %cst_7 [0] : vector<4x256xf32> to vector<256xf32>
    %19 = vector.shape_cast %18 : vector<256xf32> to vector<1x256xf32>
    %20 = vector.broadcast %19 : vector<1x256xf32> to vector<4x256xf32>
    %21 = arith.divf %17, %20 : vector<4x256xf32>
    %cst_8 = arith.constant 1.000000e-30 : f32
    %22 = vector.broadcast %cst_8 : f32 to vector<4x256xf32>
    %23 = arith.addf %21, %22 : vector<4x256xf32>
    %24 = math.log %23 : vector<4x256xf32>
    %25 = tpu.iota {dimensions = array<i32: 0>} : vector<4x256xi32>
    %26 = vector.broadcast %5 : vector<1x256xf32> to vector<4x256xf32>
    %27 = arith.cmpf oeq, %1, %26 : vector<4x256xf32>
    %c4_i32 = arith.constant 4 : i32
    %28 = vector.broadcast %c4_i32 : i32 to vector<4x256xi32>
    %29 = arith.select %27, %25, %28 : vector<4x256xi1>, vector<4x256xi32>
    %cst_9 = arith.constant dense<2147483647> : vector<256xi32>
    %30 = vector.multi_reduction <minsi>, %29, %cst_9 [0] : vector<4x256xi32> to vector<256xi32>
    %31 = vector.shape_cast %30 : vector<256xi32> to vector<1x256xi32>
    %cst_10 = arith.constant 1.000000e+00 : f32
    %32 = vector.broadcast %cst_10 : f32 to vector<1x256xf32>
    %33 = arith.divf %32, %10 : vector<1x256xf32>
    %34 = vector.broadcast %31 : vector<1x256xi32> to vector<4x256xi32>
    %35 = arith.cmpi eq, %25, %34 : vector<4x256xi32>
    %cst_11 = arith.constant 0.000000e+00 : f32
    %36 = vector.broadcast %cst_11 : f32 to vector<4x256xf32>
    %37 = arith.select %35, %21, %36 : vector<4x256xi1>, vector<4x256xf32>
    %cst_12 = arith.constant dense<0.000000e+00> : vector<256xf32>
    %38 = vector.multi_reduction <add>, %37, %cst_12 [0] : vector<4x256xf32> to vector<256xf32>
    %39 = vector.shape_cast %38 : vector<256xf32> to vector<1x256xf32>
    %40 = arith.subf %33, %39 : vector<1x256xf32>
    %41 = math.absf %40 : vector<1x256xf32>
    %42 = arith.mulf %12, %24 : vector<4x256xf32>
    %cst_13 = arith.constant dense<0.000000e+00> : vector<256xf32>
    %43 = vector.multi_reduction <add>, %42, %cst_13 [0] : vector<4x256xf32> to vector<256xf32>
    %44 = vector.shape_cast %43 : vector<256xf32> to vector<1x256xf32>
    %cst_14 = arith.constant 0.000000e+00 : f32
    %45 = vector.broadcast %cst_14 : f32 to vector<1x256xf32>
    %46 = arith.subf %45, %44 : vector<1x256xf32>
    %47 = arith.mulf %41, %46 : vector<1x256xf32>
    %c0_15 = arith.constant 0 : index
    %c0_16 = arith.constant 0 : index
    %c0_17 = arith.constant 0 : index
    %48 = vector.load %arg4[%c0_15, %c0_16, %c0_17] : memref<1x1x256xf32, #tpu.memory_space<vmem>>, vector<1x1x256xf32>
    %49 = vector.shape_cast %48 : vector<1x1x256xf32> to vector<1x256xf32>
    %50 = vector.shape_cast %47 : vector<1x256xf32> to vector<1x1x256xf32>
    tpu.vector_store %arg4[%c0_15, %c0_16, %c0_17], %50 {strides = array<i32>} : memref<1x1x256xf32, #tpu.memory_space<vmem>>, vector<1x1x256xf32>,
    %c0_18 = arith.constant 0 : index
    %c0_19 = arith.constant 0 : index
    %c0_20 = arith.constant 0 : index
    %51 = vector.load %arg5[%c0_18, %c0_19, %c0_20] : memref<1x1x256xf32, #tpu.memory_space<vmem>>, vector<1x1x256xf32>
    %52 = vector.shape_cast %51 : vector<1x1x256xf32> to vector<1x256xf32>
    %53 = vector.shape_cast %33 : vector<1x256xf32> to vector<1x1x256xf32>
    tpu.vector_store %arg5[%c0_18, %c0_19, %c0_20], %53 {strides = array<i32>} : memref<1x1x256xf32, #tpu.memory_space<vmem>>, vector<1x1x256xf32>,
    %c0_21 = arith.constant 0 : index
    %c0_22 = arith.constant 0 : index
    %c0_23 = arith.constant 0 : index
    %54 = vector.load %arg6[%c0_21, %c0_22, %c0_23] : memref<1x1x256xi32, #tpu.memory_space<vmem>>, vector<1x1x256xi32>
    %55 = vector.shape_cast %54 : vector<1x1x256xi32> to vector<1x256xi32>
    %56 = vector.shape_cast %31 : vector<1x256xi32> to vector<1x1x256xi32>
    tpu.vector_store %arg6[%c0_21, %c0_22, %c0_23], %56 {strides = array<i32>} : memref<1x1x256xi32, #tpu.memory_space<vmem>>, vector<1x1x256xi32>,
    return
  }
  func.func @transform_0(%arg0: i32, %arg1: i32) -> (i32, i32, i32) {
    %c0_i32 = arith.constant 0 : i32
    %c0_i32_0 = arith.constant 0 : i32
    return %arg0, %c0_i32, %arg1 : i32, i32, i32
  }
  func.func @transform_1(%arg0: i32, %arg1: i32) -> (i32, i32, i32) {
    %c0_i32 = arith.constant 0 : i32
    %c0_i32_0 = arith.constant 0 : i32
    return %arg0, %c0_i32, %arg1 : i32, i32, i32
  }
  func.func @transform_2(%arg0: i32, %arg1: i32) -> (i32, i32, i32) {
    %c0_i32 = arith.constant 0 : i32
    %c0_i32_0 = arith.constant 0 : i32
    return %arg0, %c0_i32, %arg1 : i32, i32, i32
  }
  func.func @transform_3(%arg0: i32, %arg1: i32) -> (i32, i32, i32) {
    %c0_i32 = arith.constant 0 : i32
    %c0_i32_0 = arith.constant 0 : i32
    return %arg0, %c0_i32, %arg1 : i32, i32, i32
  }
  func.func @transform_4(%arg0: i32, %arg1: i32) -> (i32, i32, i32) {
    %c0_i32 = arith.constant 0 : i32
    %c0_i32_0 = arith.constant 0 : i32
    return %arg0, %c0_i32, %arg1 : i32, i32, i32
  }
}

</mosaic_0001>

<llo_original>
// kernel: neg.3
$region0: #{neg.3}
  #allocation0 [shape = 's32[1]{0}', space=sflag, size = 0x4, scoped, tag = 'scoped memory for neg.3']
  %s0 = inlined_call_operand.vmem [shape: f32[4,513], index: 0, kind: input, shape index: {}]
  %s1 = inlined_call_operand.vmem [shape: f32[4,513], index: 1, kind: output, shape index: {}]
  %v2 = vld [vmem:[%s0] sm:$0xf]
  %3 = xla_tuple %v2
  %4 = xla_tuple %3
  %v5 = vxor.u32 %v2, 2147483648
  %6 = xla_tuple %v5
  %7 = vst [vmem:[%s1] sm:$0xf] %v5
  %s8 = scalar_lea.vmem %s0, 4
  %v9 = vld [vmem:[%s8] sm:$0xf]
  %10 = xla_tuple %v9
  %11 = xla_tuple %10
  %v12 = vxor.u32 %v9, 2147483648
  %13 = xla_tuple %v12
  %s14 = scalar_lea.vmem %s1, 4
  %15 = vst [vmem:[%s14] sm:$0xf] %v12
  %s16 = scalar_lea.vmem %s0, 8
  %v17 = vld [vmem:[%s16] sm:$0xf]
  %18 = xla_tuple %v17
  %19 = xla_tuple %18
  %v20 = vxor.u32 %v17, 2147483648
  %21 = xla_tuple %v20
  %s22 = scalar_lea.vmem %s1, 8
  %23 = vst [vmem:[%s22] sm:$0xf] %v20
  %s24 = scalar_lea.vmem %s0, 12
  %v25 = vld [vmem:[%s24] sm:$0xf]
  %26 = xla_tuple %v25
  %27 = xla_tuple %26
  %v28 = vxor.u32 %v25, 2147483648
  %29 = xla_tuple %v28
  %s30 = scalar_lea.vmem %s1, 12
  %31 = vst [vmem:[%s30] sm:$0xf] %v28
  %s32 = scalar_lea.vmem %s0, 16
  %v33 = vld [vmem:[%s32] sm:$0xf]
  %34 = xla_tuple %v33
  %35 = xla_tuple %34
  %v36 = vxor.u32 %v33, 2147483648
  %37 = xla_tuple %v36
  %s38 = scalar_lea.vmem %s1, 16
  %39 = vst [vmem:[%s38] sm:$0xf] %v36

// kernel: adapt_unsup_focal_loss.1
$region0: #{adapt_unsup_focal_loss.1}
  #allocation0 [shape = 'u32[]', space=smem, size = 0x4, offset = 0x4, fixed_abs, tag = 'smem constant byte address 0x4 - core index']
  #allocation1 [shape = 'u32[72,128]{1,0:T(1,128)}', space=vmem, size = 0x9000, scoped, tag = 'internal scratch']
  %s0 = inlined_call_operand.vmem [shape: f32[2,4,256], index: 0, kind: input, shape index: {}]
  %s1 = inlined_call_operand.vmem [shape: f32[2,4,256], index: 1, kind: input, shape index: {}]
  %s2 = inlined_call_operand.vmem [shape: f32[2,1,256], index: 2, kind: output, shape index: {0}]
  %s3 = inlined_call_operand.vmem [shape: f32[2,1,256], index: 3, kind: output, shape index: {1}]
  %s4 = inlined_call_operand.vmem [shape: s32[2,1,256], index: 4, kind: output, shape index: {2}]
  %5 = xla_tuple %s2, %s3, %s4
  %s6 = sld [smem:[#allocation0]]
  $region57: #{adapt_unsup_focal_loss.1} parent=0
    _
  %s8 = ssub.s32 1, %s6
  %s9 = scalar_select 0, %s8, %s6
  loop: start=0, step=1, limit=4
  $region2: #{adapt_unsup_focal_loss.1} parent=0 // loop_pre_header
    _
  $region3: #{adapt_unsup_focal_loss.1} parent=0 // loop_header
    %s11 = sphi 0, %s15
    %p12 = scmp.ge.s32.totalorder %s11, 4
    %s18 = sphi 0, %s30
    %s19 = sphi 0, %s26
    %s20 = sphi 0, %s18
    %s21 = sphi 0, %s19
    %s22 = sphi 0, %s20
    %s23 = sphi 0, %s21
    %s35 = sphi 0, %s37
    %s38 = sphi 0, %s35
    %s39 = sphi 0, %s38
    %s55 = sphi 0, %s39
    %s63 = sphi 0, %s65
    %s66 = sphi 0, %s63
    %s67 = sphi 0, %s66
    %s83 = sphi 0, %s67
    %s91 = sphi 0, %s93
    %s94 = sphi 0, %s91
    %s95 = sphi 0, %s94
    %s111 = sphi 0, %s95
    %s119 = sphi 0, %s121
    %s122 = sphi 0, %s119
    %s123 = sphi 0, %s122
    %s139 = sphi 0, %s123
    %s147 = sphi 0, %s149
    %s150 = sphi 0, %s147
    %s151 = sphi 0, %s150
    %s167 = sphi 0, %s151
  $region4: #{adapt_unsup_focal_loss.1} parent=0 // loop_header_branch
    %14 = sbr.rel (%p12) target = $region8
  $region5: #{adapt_unsup_focal_loss.1} parent=0 // loop_body
    %s16 = ssub.s32 %s11, 1
    %s17 = ssub.s32 %s11, 2
    %s24 = sadd.s32 1, %s19
    %p25 = scmp.ge.s32.totalorder %s24, 1
    %s26 = scalar_select %p25, 0, %s24
    %s27 = sadd.s32 1, %s18
    %s28 = scalar_select %p25, %s27, %s18
    %p29 = scmp.ge.s32.totalorder %s28, 2
    %s30 = scalar_select %p29, 0, %s28
    %s31 = ssub.s32 %s18, %s30
    %s32 = ssub.s32 %s19, %s26
    %s33 = sor.u32 %s31, %s32
    %p34 = scmp.eq.s32.totalorder %s33, 0
    %s36 = sadd.s32 %s35, 1
    %s37 = scalar_select %p34, %s35, %s36
    %p40 = pneg %p34
    %p41 = scmp.eq.s32.totalorder %s11, 1
    %p42 = por %p40, %p41
    %p43 = scmp.ne.s32.totalorder %s35, %s38
    %p44 = scmp.eq.s32.totalorder %s11, 0
    %p45 = por %p43, %p44
    %p46 = scmp.ne.s32.totalorder %s35, %s38
    %p47 = scmp.eq.s32.totalorder %s16, 1
    %p48 = por %p46, %p47
    %p49 = scmp.ne.s32.totalorder %s38, %s39
    %p50 = scmp.eq.s32.totalorder %s16, 0
    %p51 = por %p49, %p50
    %p52 = scmp.ne.s32.totalorder %s38, %s39
    %p53 = scmp.eq.s32.totalorder %s17, 1
    %p54 = por %p52, %p53
    %p56 = scmp.ne.s32.totalorder %s39, %s55
    %p57 = scmp.eq.s32.totalorder %s17, 0
    %p58 = por %p56, %p57
    %s59 = ssub.s32 %s18, %s30
    %s60 = ssub.s32 %s19, %s26
    %s61 = sor.u32 %s59, %s60
    %p62 = scmp.eq.s32.totalorder %s61, 0
    %s64 = sadd.s32 %s63, 1
    %s65 = scalar_select %p62, %s63, %s64
    %p68 = pneg %p62
    %p69 = scmp.eq.s32.totalorder %s11, 1
    %p70 = por %p68, %p69
    %p71 = scmp.ne.s32.totalorder %s63, %s66
    %p72 = scmp.eq.s32.totalorder %s11, 0
    %p73 = por %p71, %p72
    %p74 = scmp.ne.s32.totalorder %s63, %s66
    %p75 = scmp.eq.s32.totalorder %s16, 1
    %p76 = por %p74, %p75
    %p77 = scmp.ne.s32.totalorder %s66, %s67
    %p78 = scmp.eq.s32.totalorder %s16, 0
    %p79 = por %p77, %p78
    %p80 = scmp.ne.s32.totalorder %s66, %s67
    %p81 = scmp.eq.s32.totalorder %s17, 1
    %p82 = por %p80, %p81
    %p84 = scmp.ne.s32.totalorder %s67, %s83
    %p85 = scmp.eq.s32.totalorder %s17, 0
    %p86 = por %p84, %p85
    %s87 = ssub.s32 %s18, %s30
    %s88 = ssub.s32 %s19, %s26
    %s89 = sor.u32 %s87, %s88
    %p90 = scmp.eq.s32.totalorder %s89, 0
    %s92 = sadd.s32 %s91, 1
    %s93 = scalar_select %p90, %s91, %s92
    %p96 = pneg %p90
    %p97 = scmp.eq.s32.totalorder %s11, 1
    %p98 = por %p96, %p97
    %p99 = scmp.ne.s32.totalorder %s91, %s94
    %p100 = scmp.eq.s32.totalorder %s11, 0
    %p101 = por %p99, %p100
    %p102 = scmp.ne.s32.totalorder %s91, %s94
    %p103 = scmp.eq.s32.totalorder %s16, 1
    %p104 = por %p102, %p103
    %p105 = scmp.ne.s32.totalorder %s94, %s95
    %p106 = scmp.eq.s32.totalorder %s16, 0
    %p107 = por %p105, %p106
    %p108 = scmp.ne.s32.totalorder %s94, %s95
    %p109 = scmp.eq.s32.totalorder %s17, 1
    %p110 = por %p108, %p109
    %p112 = scmp.ne.s32.totalorder %s95, %s111
    %p113 = scmp.eq.s32.totalorder %s17, 0
    %p114 = por %p112, %p113
    %s115 = ssub.s32 %s18, %s30
    %s116 = ssub.s32 %s19, %s26
    %s117 = sor.u32 %s115, %s116
    %p118 = scmp.eq.s32.totalorder %s117, 0
    %s120 = sadd.s32 %s119, 1
    %s121 = scalar_select %p118, %s119, %s120
    %p124 = pneg %p118
    %p125 = scmp.eq.s32.totalorder %s11, 1
    %p126 = por %p124, %p125
    %p127 = scmp.ne.s32.totalorder %s119, %s122
    %p128 = scmp.eq.s32.totalorder %s11, 0
    %p129 = por %p127, %p128
    %p130 = scmp.ne.s32.totalorder %s119, %s122
    %p131 = scmp.eq.s32.totalorder %s16, 1
    %p132 = por %p130, %p131
    %p133 = scmp.ne.s32.totalorder %s122, %s123
    %p134 = scmp.eq.s32.totalorder %s16, 0
    %p135 = por %p133, %p134
    %p136 = scmp.ne.s32.totalorder %s122, %s123
    %p137 = scmp.eq.s32.totalorder %s17, 1
    %p138 = por %p136, %p137
    %p140 = scmp.ne.s32.totalorder %s123, %s139
    %p141 = scmp.eq.s32.totalorder %s17, 0
    %p142 = por %p140, %p141
    %s143 = ssub.s32 %s18, %s30
    %s144 = ssub.s32 %s19, %s26
    %s145 = sor.u32 %s143, %s144
    %p146 = scmp.eq.s32.totalorder %s145, 0
    %s148 = sadd.s32 %s147, 1
    %s149 = scalar_select %p146, %s147, %s148
    %p152 = pneg %p146
    %p153 = scmp.eq.s32.totalorder %s11, 1
    %p154 = por %p152, %p153
    %p155 = scmp.ne.s32.totalorder %s147, %s150
    %p156 = scmp.eq.s32.totalorder %s11, 0
    %p157 = por %p155, %p156
    %p158 = scmp.ne.s32.totalorder %s147, %s150
    %p159 = scmp.eq.s32.totalorder %s16, 1
    %p160 = por %p158, %p159
    %p161 = scmp.ne.s32.totalorder %s150, %s151
    %p162 = scmp.eq.s32.totalorder %s16, 0
    %p163 = por %p161, %p162
    %p164 = scmp.ne.s32.totalorder %s150, %s151
    %p165 = scmp.eq.s32.totalorder %s17, 1
    %p166 = por %p164, %p165
    %p168 = scmp.ne.s32.totalorder %s151, %s167
    %p169 = scmp.eq.s32.totalorder %s17, 0
    %p170 = por %p168, %p169
    %p171 = scmp.le.s32.totalorder 1, %s11
    %p172 = scmp.lt.s32.totalorder %s11, 3
    %p173 = pnand %p171, %p172
    %p174 = pneg %p173
    // Predicated region
    $region9: #{adapt_unsup_focal_loss.1} parent=5 // pred_check
      _
    $region10: #{adapt_unsup_focal_loss.1} parent=5 // pred_check_branch
      %176 = sbr.rel (%p173) target = $region12
    $region11: #{adapt_unsup_focal_loss.1} parent=5 // pred_region
      %s177 = ssub.s32 %s11, 1
    $region12: #{adapt_unsup_focal_loss.1} parent=5 // pred_fallthru
      _
    %p178 = scmp.lt.s32.totalorder %s11, 2
    // Predicated region
    $region13: #{adapt_unsup_focal_loss.1} parent=5 // pred_check
      %p179 = pneg %p178
    $region14: #{adapt_unsup_focal_loss.1} parent=5 // pred_check_branch
      %181 = sbr.rel (%p179) target = $region16
    $region15: #{adapt_unsup_focal_loss.1} parent=5 // pred_region
      // Predicated region
      $region17: #{adapt_unsup_focal_loss.1} parent=15 // pred_check
        %p182 = pneg %p45
      $region18: #{adapt_unsup_focal_loss.1} parent=15 // pred_check_branch
        %184 = sbr.rel (%p182) target = $region20
      $region19: #{adapt_unsup_focal_loss.1} parent=15 // pred_region
        %s185 = smul.u32 2, %s19
        %p186 = scmp.lt.s32.totalorder %s18, 1
        %s187 = scalar_select %p186, %s18, 1
        %p188 = scmp.lt.s32.totalorder %s185, 1
        %s189 = scalar_select %p188, %s185, 1
        %s190 = smul.addr %s187, 2
        %s191 = sadd.s32 %s189, %s190
        %s192 = smul.addr %s191, 4
        %s193 = scalar_lea.vmem %s0, %s192
        %s194 = smul.u32 2, %s19
      $region20: #{adapt_unsup_focal_loss.1} parent=15 // pred_fallthru
        _
      // Predicated region
      $region21: #{adapt_unsup_focal_loss.1} parent=15 // pred_check
        %p195 = pneg %p73
      $region22: #{adapt_unsup_focal_loss.1} parent=15 // pred_check_branch
        %197 = sbr.rel (%p195) target = $region24
      $region23: #{adapt_unsup_focal_loss.1} parent=15 // pred_region
        %s198 = smul.u32 2, %s19
        %p199 = scmp.lt.s32.totalorder %s18, 1
        %s200 = scalar_select %p199, %s18, 1
        %p201 = scmp.lt.s32.totalorder %s198, 1
        %s202 = scalar_select %p201, %s198, 1
        %s203 = smul.addr %s200, 2
        %s204 = sadd.s32 %s202, %s203
        %s205 = smul.addr %s204, 4
        %s206 = scalar_lea.vmem %s1, %s205
        %s207 = smul.u32 2, %s19
      $region24: #{adapt_unsup_focal_loss.1} parent=15 // pred_fallthru
        _
    $region16: #{adapt_unsup_focal_loss.1} parent=5 // pred_fallthru
      _
    %p208 = scmp.le.s32.totalorder 1, %s11
    %p209 = scmp.lt.s32.totalorder %s11, 3
    %p210 = pnand %p208, %p209
    %p211 = pneg %p210
    // Predicated region
    $region25: #{adapt_unsup_focal_loss.1} parent=5 // pred_check
      _
    $region26: #{adapt_unsup_focal_loss.1} parent=5 // pred_check_branch
      %213 = sbr.rel (%p210) target = $region28
    $region27: #{adapt_unsup_focal_loss.1} parent=5 // pred_region
      %s214 = ssub.s32 %s11, 1
      %s215 = smul.u32 2, %s21
      %p216 = scmp.lt.s32.totalorder %s20, 1
      %s217 = scalar_select %p216, %s20, 1
      %p218 = scmp.lt.s32.totalorder %s215, 1
      %s219 = scalar_select %p218, %s215, 1
      %s220 = smul.addr %s217, 2
      %s221 = sadd.s32 %s219, %s220
      %s222 = smul.addr %s221, 4
      %s223 = scalar_lea.vmem %s0, %s222
      %p224 = pneg %p51
      %p225 = pneg %p48
      %s226 = smul.u32 2, %s21
      %p227 = scmp.lt.s32.totalorder %s20, 1
      %s228 = scalar_select %p227, %s20, 1
      %p229 = scmp.lt.s32.totalorder %s226, 1
      %s230 = scalar_select %p229, %s226, 1
      %s231 = smul.addr %s228, 2
      %s232 = sadd.s32 %s230, %s231
      %s233 = smul.addr %s232, 4
      %s234 = scalar_lea.vmem %s1, %s233
      %p235 = pneg %p79
      %p236 = pneg %p76
      %p237 = pneg %p107
      %p238 = pneg %p104
      %s239 = smul.u32 2, %s21
      %p240 = scmp.lt.s32.totalorder %s20, 1
      %s241 = scalar_select %p240, %s20, 1
      %p242 = scmp.lt.s32.totalorder %s239, 1
      %s243 = scalar_select %p242, %s239, 1
      %s244 = smul.addr %s241, 2
      %s245 = sadd.s32 %s243, %s244
      %s246 = scalar_lea.vmem %s2, %s245
      %p247 = pneg %p135
      %p248 = pneg %p132
      %s249 = smul.u32 2, %s21
      %p250 = scmp.lt.s32.totalorder %s20, 1
      %s251 = scalar_select %p250, %s20, 1
      %p252 = scmp.lt.s32.totalorder %s249, 1
      %s253 = scalar_select %p252, %s249, 1
      %s254 = smul.addr %s251, 2
      %s255 = sadd.s32 %s253, %s254
      %s256 = scalar_lea.vmem %s3, %s255
      %p257 = pneg %p163
      %p258 = pneg %p160
      %s259 = smul.u32 2, %s21
      %p260 = scmp.lt.s32.totalorder %s20, 1
      %s261 = scalar_select %p260, %s20, 1
      %p262 = scmp.lt.s32.totalorder %s259, 1
      %s263 = scalar_select %p262, %s259, 1
      %s264 = smul.addr %s261, 2
      %s265 = sadd.s32 %s263, %s264
      %s266 = scalar_lea.vmem %s4, %s265
      %s267 = smul.u32 2, %s21
      %p268 = scmp.lt.s32.totalorder %s20, 1
      %s269 = scalar_select %p268, %s20, 1
      %p270 = scmp.lt.s32.totalorder %s267, 1
      %s271 = scalar_select %p270, %s267, 1
      %s272 = smul.addr %s269, 2
      %s273 = sadd.s32 %s271, %s272
      %s274 = smul.addr %s273, 4
      %s275 = scalar_lea.vmem %s0, %s274
      %s276 = smul.u32 2, %s21
      %s277 = smul.u32 2, %s21
      %p278 = scmp.lt.s32.totalorder %s20, 1
      %s279 = scalar_select %p278, %s20, 1
      %p280 = scmp.lt.s32.totalorder %s277, 1
      %s281 = scalar_select %p280, %s277, 1
      %s282 = smul.addr %s279, 2
      %s283 = sadd.s32 %s281, %s282
      %s284 = smul.addr %s283, 4
      %s285 = scalar_lea.vmem %s1, %s284
      %s286 = smul.u32 2, %s21
      %s287 = smul.u32 2, %s21
      %p288 = scmp.lt.s32.totalorder %s20, 1
      %s289 = scalar_select %p288, %s20, 1
      %p290 = scmp.lt.s32.totalorder %s287, 1
      %s291 = scalar_select %p290, %s287, 1
      %s292 = smul.addr %s289, 2
      %s293 = sadd.s32 %s291, %s292
      %s294 = scalar_lea.vmem %s2, %s293
      %s295 = smul.u32 2, %s21
      %s296 = smul.u32 2, %s21
      %p297 = scmp.lt.s32.totalorder %s20, 1
      %s298 = scalar_select %p297, %s20, 1
      %p299 = scmp.lt.s32.totalorder %s296, 1
      %s300 = scalar_select %p299, %s296, 1
      %s301 = smul.addr %s298, 2
      %s302 = sadd.s32 %s300, %s301
      %s303 = scalar_lea.vmem %s3, %s302
      %s304 = smul.u32 2, %s21
      %s305 = smul.u32 2, %s21
      %p306 = scmp.lt.s32.totalorder %s20, 1
      %s307 = scalar_select %p306, %s20, 1
      %p308 = scmp.lt.s32.totalorder %s305, 1
      %s309 = scalar_select %p308, %s305, 1
      %s310 = smul.addr %s307, 2
      %s311 = sadd.s32 %s309, %s310
      %s312 = scalar_lea.vmem %s4, %s311
      %s313 = smul.u32 2, %s21
      %v314 = vld [vmem:[%s275] sm:$0xff]
      %v315 = vld [vmem:[%s285] sm:$0xff]
      %317 = vst [vmem:[#allocation1] ss:$2 sm:$0xff] %v314
      %v318 = vld.sshfl [vmem:[#allocation1] sm:$0xff pattern:$0x75316420]
      %v319 = vld.sshfl [vmem:[#allocation1 + $0x8] sm:$0xff pattern:$0x75316420]
      %vm322 = vcmask 1043456
      %v323 = vsel %vm322, %v318, -inf
      %v324 = vrot.slane %v323, 4
      %v325 = vmax.f32 %v323, %v324
      %v326 = vrot.slane %v325, 2
      %v327 = vmax.f32 %v325, %v326
      %v328 = vrot.slane %v327, 1
      %v329 = vmax.f32 %v327, %v328
      %v330 = vsel %vm322, %v319, -inf
      %v331 = vrot.slane %v330, 4
      %v332 = vmax.f32 %v330, %v331
      %v333 = vrot.slane %v332, 2
      %v334 = vmax.f32 %v332, %v333
      %v335 = vrot.slane %v334, 1
      %v336 = vmax.f32 %v334, %v335
      %v339 = vrot.slane %v336, 4
      %v340 = vsel %vm322, %v329, %v339
      %v342 = vsub.f32 %v314, %v340
      %v343 = vmul.f32 %v342, 1.442695
      %v344 = vpow.pop %v343
      %346 = vst [vmem:[#allocation1] ss:$2 sm:$0xff] %v344
      %v347 = vld.sshfl [vmem:[#allocation1] sm:$0xff pattern:$0x75316420]
      %v348 = vld.sshfl [vmem:[#allocation1 + $0x8] sm:$0xff pattern:$0x75316420]
      %v351 = vsel %vm322, %v347, 0.0
      %v352 = vrot.slane %v351, 4
      %v353 = vadd.f32 %v351, %v352
      %v354 = vrot.slane %v353, 2
      %v355 = vadd.f32 %v353, %v354
      %v356 = vrot.slane %v355, 1
      %v357 = vadd.f32 %v355, %v356
      %v358 = vsel %vm322, %v348, 0.0
      %v359 = vrot.slane %v358, 4
      %v360 = vadd.f32 %v358, %v359
      %v361 = vrot.slane %v360, 2
      %v362 = vadd.f32 %v360, %v361
      %v363 = vrot.slane %v362, 1
      %v364 = vadd.f32 %v362, %v363
      %v367 = vrot.slane %v364, 4
      %v368 = vsel %vm322, %v357, %v367
      %v370 = vrcp.pop %v368
      %v371 = vmul.f32 %v368, %v370
      %v372 = vsub.f32 1.0, %v371
      %v373 = vmul.f32 %v370, %v372
      %v374 = vadd.f32 %v370, %v373
      %vm375 = vweird.f32 %v368
      %vm376 = vweird.f32 %v370
      %vm377 = vmor %vm375, %vm376
      %v378 = vsel %vm377, %v370, %v374
      %v379 = vand.u32 2147483647, %v368
      %vm380 = vcmp.eq.f32.partialorder %v379, 8.507059e+37
      %v381 = vand.u32 %v368, 2147483648
      %v382 = vor.u32 1.1754944e-38, %v381
      %v383 = vsel %vm380, %v382, %v378
      %v384 = vmul.f32 %v344, %v383
      %386 = vst [vmem:[#allocation1] ss:$2 sm:$0xff] %v315
      %v387 = vld.sshfl [vmem:[#allocation1] sm:$0xff pattern:$0x75316420]
      %v388 = vld.sshfl [vmem:[#allocation1 + $0x8] sm:$0xff pattern:$0x75316420]
      %v391 = vsel %vm322, %v387, -inf
      %v392 = vrot.slane %v391, 4
      %v393 = vmax.f32 %v391, %v392
      %v394 = vrot.slane %v393, 2
      %v395 = vmax.f32 %v393, %v394
      %v396 = vrot.slane %v395, 1
      %v397 = vmax.f32 %v395, %v396
      %v398 = vsel %vm322, %v388, -inf
      %v399 = vrot.slane %v398, 4
      %v400 = vmax.f32 %v398, %v399
      %v401 = vrot.slane %v400, 2
      %v402 = vmax.f32 %v400, %v401
      %v403 = vrot.slane %v402, 1
      %v404 = vmax.f32 %v402, %v403
      %v407 = vrot.slane %v404, 4
      %v408 = vsel %vm322, %v397, %v407
      %v410 = vsub.f32 %v315, %v408
      %v411 = vmul.f32 %v410, 1.442695
      %v412 = vpow.pop %v411
      %414 = vst [vmem:[#allocation1] ss:$2 sm:$0xff] %v412
      %v415 = vld.sshfl [vmem:[#allocation1] sm:$0xff pattern:$0x75316420]
      %v416 = vld.sshfl [vmem:[#allocation1 + $0x8] sm:$0xff pattern:$0x75316420]
      %v419 = vsel %vm322, %v415, 0.0
      %v420 = vrot.slane %v419, 4
      %v421 = vadd.f32 %v419, %v420
      %v422 = vrot.slane %v421, 2
      %v423 = vadd.f32 %v421, %v422
      %v424 = vrot.slane %v423, 1
      %v425 = vadd.f32 %v423, %v424
      %v426 = vsel %vm322, %v416, 0.0
      %v427 = vrot.slane %v426, 4
      %v428 = vadd.f32 %v426, %v427
      %v429 = vrot.slane %v428, 2
      %v430 = vadd.f32 %v428, %v429
      %v431 = vrot.slane %v430, 1
      %v432 = vadd.f32 %v430, %v431
      %v435 = vrot.slane %v432, 4
      %v436 = vsel %vm322, %v425, %v435
      %v438 = vrcp.pop %v436
      %v439 = vmul.f32 %v436, %v438
      %v440 = vsub.f32 1.0, %v439
      %v441 = vmul.f32 %v438, %v440
      %v442 = vadd.f32 %v438, %v441
      %vm443 = vweird.f32 %v436
      %vm444 = vweird.f32 %v438
      %vm445 = vmor %vm443, %vm444
      %v446 = vsel %vm445, %v438, %v442
      %v447 = vand.u32 2147483647, %v436
      %vm448 = vcmp.eq.f32.partialorder %v447, 8.507059e+37
      %v449 = vand.u32 %v436, 2147483648
      %v450 = vor.u32 1.1754944e-38, %v449
      %v451 = vsel %vm448, %v450, %v446
      %v452 = vmul.f32 %v412, %v451
      %v453 = vadd.f32 %v452, 1e-30
      %v454 = vlog2.pop %v453
      %v455 = vmul.f32 %v454, 0.6931472
      %v456 = vlaneseq
      %v457 = vshrl.u32 %v456, 7
      %vm458 = vcmp.eq.f32.partialorder %v314, %v340
      %v460 = vunpack.c.l.s4 839922192
      %v461 = vunpack.c.0.s8 %v460
      %v462 = vperm.slane %v457, %v461
      %v463 = vsel %vm458, %v462, 4
      %464 = vst [vmem:[#allocation1] ss:$2 sm:$0xff] %v463
      %v465 = vld.sshfl [vmem:[#allocation1] sm:$0xff pattern:$0x75316420]
      %v466 = vld.sshfl [vmem:[#allocation1 + $0x8] sm:$0xff pattern:$0x75316420]
      %v467 = vsel %vm322, %v465, 2147483647
      %v468 = vrot.slane %v467, 4
      %vm469 = vcmp.lt.s32.totalorder %v467, %v468
      %v470 = vsel %vm469, %v467, %v468
      %v471 = vrot.slane %v470, 2
      %vm472 = vcmp.lt.s32.totalorder %v470, %v471
      %v473 = vsel %vm472, %v470, %v471
      %v474 = vrot.slane %v473, 1
      %vm475 = vcmp.lt.s32.totalorder %v473, %v474
      %v476 = vsel %vm475, %v473, %v474
      %v477 = vsel %vm322, %v466, 2147483647
      %v478 = vrot.slane %v477, 4
      %vm479 = vcmp.lt.s32.totalorder %v477, %v478
      %v480 = vsel %vm479, %v477, %v478
      %v481 = vrot.slane %v480, 2
      %vm482 = vcmp.lt.s32.totalorder %v480, %v481
      %v483 = vsel %vm482, %v480, %v481
      %v484 = vrot.slane %v483, 1
      %vm485 = vcmp.lt.s32.totalorder %v483, %v484
      %v486 = vsel %vm485, %v483, %v484
      %v487 = vrcp.pop %v357
      %v488 = vmul.f32 %v357, %v487
      %v489 = vsub.f32 1.0, %v488
      %v490 = vmul.f32 %v487, %v489
      %v491 = vadd.f32 %v487, %v490
      %vm492 = vweird.f32 %v357
      %vm493 = vweird.f32 %v487
      %vm494 = vmor %vm492, %vm493
      %v495 = vsel %vm494, %v487, %v491
      %v496 = vand.u32 2147483647, %v357
      %vm497 = vcmp.eq.f32.partialorder %v496, 8.507059e+37
      %v498 = vand.u32 %v357, 2147483648
      %v499 = vor.u32 1.1754944e-38, %v498
      %v500 = vsel %vm497, %v499, %v495
      %v501 = vmul.f32 1.0, %v500
      %v502 = vrcp.pop %v364
      %v503 = vmul.f32 %v364, %v502
      %v504 = vsub.f32 1.0, %v503
      %v505 = vmul.f32 %v502, %v504
      %v506 = vadd.f32 %v502, %v505
      %vm507 = vweird.f32 %v364
      %vm508 = vweird.f32 %v502
      %vm509 = vmor %vm507, %vm508
      %v510 = vsel %vm509, %v502, %v506
      %v511 = vand.u32 2147483647, %v364
      %vm512 = vcmp.eq.f32.partialorder %v511, 8.507059e+37
      %v513 = vand.u32 %v364, 2147483648
      %v514 = vor.u32 1.1754944e-38, %v513
      %v515 = vsel %vm512, %v514, %v510
      %v516 = vmul.f32 1.0, %v515
      %vm517 = vcmp.eq.s32.totalorder %v457, %v476
      %vm518 = vcmp.eq.s32.totalorder %v457, %v486
      %520 = vst [vmem:[#allocation1] ss:$2 sm:$0xff] %v452
      %v521 = vld.sshfl [vmem:[#allocation1] sm:$0xff pattern:$0x75316420]
      %v522 = vld.sshfl [vmem:[#allocation1 + $0x8] sm:$0xff pattern:$0x75316420]
      %v525 = vsel %vm517, %v521, 0.0
      %v526 = vsel %vm518, %v522, 0.0
      %v527 = vsel %vm322, %v525, 0.0
      %v528 = vrot.slane %v527, 4
      %v529 = vadd.f32 %v527, %v528
      %v530 = vrot.slane %v529, 2
      %v531 = vadd.f32 %v529, %v530
      %v532 = vrot.slane %v531, 1
      %v533 = vadd.f32 %v531, %v532
      %v534 = vsel %vm322, %v526, 0.0
      %v535 = vrot.slane %v534, 4
      %v536 = vadd.f32 %v534, %v535
      %v537 = vrot.slane %v536, 2
      %v538 = vadd.f32 %v536, %v537
      %v539 = vrot.slane %v538, 1
      %v540 = vadd.f32 %v538, %v539
      %v541 = vsub.f32 %v501, %v533
      %v542 = vsub.f32 %v516, %v540
      %v543 = vand.u32 2147483647, %v541
      %v544 = vand.u32 2147483647, %v542
      %v545 = vmul.f32 %v384, %v455
      %547 = vst [vmem:[#allocation1] ss:$2 sm:$0xff] %v545
      %v548 = vld.sshfl [vmem:[#allocation1] sm:$0xff pattern:$0x75316420]
      %v549 = vld.sshfl [vmem:[#allocation1 + $0x8] sm:$0xff pattern:$0x75316420]
      %v552 = vsel %vm322, %v548, 0.0
      %v553 = vrot.slane %v552, 4
      %v554 = vadd.f32 %v552, %v553
      %v555 = vrot.slane %v554, 2
      %v556 = vadd.f32 %v554, %v555
      %v557 = vrot.slane %v556, 1
      %v558 = vadd.f32 %v556, %v557
      %v559 = vsel %vm322, %v549, 0.0
      %v560 = vrot.slane %v559, 4
      %v561 = vadd.f32 %v559, %v560
      %v562 = vrot.slane %v561, 2
      %v563 = vadd.f32 %v561, %v562
      %v564 = vrot.slane %v563, 1
      %v565 = vadd.f32 %v563, %v564
      %v566 = vsub.f32 0.0, %v558
      %v567 = vsub.f32 0.0, %v565
      %v568 = vmul.f32 %v543, %v566
      %v569 = vmul.f32 %v544, %v567
      %v572 = vrot.slane %v569, 7
      %vm573 = vcmask 1040384
      %v574 = vsel %vm573, %v568, %v572
      %v576 = vlaneseq
      %vm577 = vcmp.ge.s32.totalorder %v576, 0
      %vm578 = vcmp.lt.s32.totalorder %v576, 256
      %vm579 = vmand %vm577, %vm578
      %580 = vst.msk [vmem:[%s294] sm:$0x3] %vm579, %v574
      %v583 = vrot.slane %v516, 7
      %v584 = vsel %vm573, %v501, %v583
      %586 = vst.msk [vmem:[%s303] sm:$0x3] %vm579, %v584
      %v587 = vrot.slane %v486, 7
      %v588 = vsel %vm573, %v476, %v587
      %589 = vst.msk [vmem:[%s312] sm:$0x3] %vm579, %v588
      %s590 = smul.u32 2, %s21
      %p591 = scmp.lt.s32.totalorder %s20, 1
      %s592 = scalar_select %p591, %s20, 1
      %p593 = scmp.lt.s32.totalorder %s590, 1
      %s594 = scalar_select %p593, %s590, 1
      %s595 = smul.addr %s592, 2
      %s596 = sadd.s32 %s594, %s595
      %s597 = scalar_lea.vmem %s2, %s596
      %s598 = smul.u32 2, %s21
      %p599 = scmp.lt.s32.totalorder %s20, 1
      %s600 = scalar_select %p599, %s20, 1
      %p601 = scmp.lt.s32.totalorder %s598, 1
      %s602 = scalar_select %p601, %s598, 1
      %s603 = smul.addr %s600, 2
      %s604 = sadd.s32 %s602, %s603
      %s605 = scalar_lea.vmem %s3, %s604
      %s606 = smul.u32 2, %s21
      %p607 = scmp.lt.s32.totalorder %s20, 1
      %s608 = scalar_select %p607, %s20, 1
      %p609 = scmp.lt.s32.totalorder %s606, 1
      %s610 = scalar_select %p609, %s606, 1
      %s611 = smul.addr %s608, 2
      %s612 = sadd.s32 %s610, %s611
      %s613 = scalar_lea.vmem %s4, %s612
      // Predicated region
      $region29: #{adapt_unsup_focal_loss.1} parent=27 // pred_check
        %p614 = pneg %p104
      $region30: #{adapt_unsup_focal_loss.1} parent=27 // pred_check_branch
        %616 = sbr.rel (%p614) target = $region32
      $region31: #{adapt_unsup_focal_loss.1} parent=27 // pred_region
        %s617 = smul.u32 2, %s21
      $region32: #{adapt_unsup_focal_loss.1} parent=27 // pred_fallthru
        _
      // Predicated region
      $region33: #{adapt_unsup_focal_loss.1} parent=27 // pred_check
        %p618 = pneg %p132
      $region34: #{adapt_unsup_focal_loss.1} parent=27 // pred_check_branch
        %620 = sbr.rel (%p618) target = $region36
      $region35: #{adapt_unsup_focal_loss.1} parent=27 // pred_region
        %s621 = smul.u32 2, %s21
      $region36: #{adapt_unsup_focal_loss.1} parent=27 // pred_fallthru
        _
      // Predicated region
      $region37: #{adapt_unsup_focal_loss.1} parent=27 // pred_check
        %p622 = pneg %p160
      $region38: #{adapt_unsup_focal_loss.1} parent=27 // pred_check_branch
        %624 = sbr.rel (%p622) target = $region40
      $region39: #{adapt_unsup_focal_loss.1} parent=27 // pred_region
        %s625 = smul.u32 2, %s21
      $region40: #{adapt_unsup_focal_loss.1} parent=27 // pred_fallthru
        _
    $region28: #{adapt_unsup_focal_loss.1} parent=5 // pred_fallthru
      _
    %p626 = scmp.le.s32.totalorder 2, %s11
    // Predicated region
    $region41: #{adapt_unsup_focal_loss.1} parent=5 // pred_check
      %p627 = pneg %p626
    $region42: #{adapt_unsup_focal_loss.1} parent=5 // pred_check_branch
      %629 = sbr.rel (%p627) target = $region44
    $region43: #{adapt_unsup_focal_loss.1} parent=5 // pred_region
      %s630 = ssub.s32 %s11, 2
      // Predicated region
      $region45: #{adapt_unsup_focal_loss.1} parent=43 // pred_check
        %p631 = pneg %p110
      $region46: #{adapt_unsup_focal_loss.1} parent=43 // pred_check_branch
        %633 = sbr.rel (%p631) target = $region48
      $region47: #{adapt_unsup_focal_loss.1} parent=43 // pred_region
        %s634 = smul.u32 2, %s23
        %p635 = scmp.lt.s32.totalorder %s22, 1
        %s636 = scalar_select %p635, %s22, 1
        %p637 = scmp.lt.s32.totalorder %s634, 1
        %s638 = scalar_select %p637, %s634, 1
        %s639 = smul.addr %s636, 2
        %s640 = sadd.s32 %s638, %s639
        %s641 = scalar_lea.vmem %s2, %s640
      $region48: #{adapt_unsup_focal_loss.1} parent=43 // pred_fallthru
        _
      // Predicated region
      $region49: #{adapt_unsup_focal_loss.1} parent=43 // pred_check
        %p642 = pneg %p138
      $region50: #{adapt_unsup_focal_loss.1} parent=43 // pred_check_branch
        %644 = sbr.rel (%p642) target = $region52
      $region51: #{adapt_unsup_focal_loss.1} parent=43 // pred_region
        %s645 = smul.u32 2, %s23
        %p646 = scmp.lt.s32.totalorder %s22, 1
        %s647 = scalar_select %p646, %s22, 1
        %p648 = scmp.lt.s32.totalorder %s645, 1
        %s649 = scalar_select %p648, %s645, 1
        %s650 = smul.addr %s647, 2
        %s651 = sadd.s32 %s649, %s650
        %s652 = scalar_lea.vmem %s3, %s651
      $region52: #{adapt_unsup_focal_loss.1} parent=43 // pred_fallthru
        _
      // Predicated region
      $region53: #{adapt_unsup_focal_loss.1} parent=43 // pred_check
        %p653 = pneg %p166
      $region54: #{adapt_unsup_focal_loss.1} parent=43 // pred_check_branch
        %655 = sbr.rel (%p653) target = $region56
      $region55: #{adapt_unsup_focal_loss.1} parent=43 // pred_region
        %s656 = smul.u32 2, %s23
        %p657 = scmp.lt.s32.totalorder %s22, 1
        %s658 = scalar_select %p657, %s22, 1
        %p659 = scmp.lt.s32.totalorder %s656, 1
        %s660 = scalar_select %p659, %s656, 1
        %s661 = smul.addr %s658, 2
        %s662 = sadd.s32 %s660, %s661
        %s663 = scalar_lea.vmem %s4, %s662
      $region56: #{adapt_unsup_focal_loss.1} parent=43 // pred_fallthru
        _
    $region44: #{adapt_unsup_focal_loss.1} parent=5 // pred_fallthru
      _
  $region6: #{adapt_unsup_focal_loss.1} parent=0 // loop_footer
    %s15 = sadd.s32 1, %s11
  $region7: #{adapt_unsup_focal_loss.1} parent=0 // loop_footer_branch
    %10 = sbr.rel target = $region3
  $region8: #{adapt_unsup_focal_loss.1} parent=0 // loop_exit
    _

</llo_original>
